<compile_context>
chip_gen: v5e
topology: v5e:2x2
jax: 0.10.0
libtpu: 0.0.40
codegen_flags: <defaults>
</compile_context>

<pallas_src>
import functools

import jax
import jax.numpy as jnp
from jax.experimental import pallas as pl
from jax.experimental.pallas import tpu as pltpu


def _round_up(x, m):
    return ((x + m - 1) // m) * m


def _fit_tile(dim_pad, pref):
    """Largest multiple of 128 that divides dim_pad and is <= pref."""
    t = max(128, (min(pref, dim_pad) // 128) * 128)
    while dim_pad % t:
        t -= 128
    return t


def gcn_aggregate_kernel(a_ref, z_ref, b_ref, o_ref, acc_ref, *, apply_relu):
    """acc[i, :] += A[i, k] @ Z[k, :]; bias + optional ReLU on the last K block."""
    k = pl.program_id(1)

    @pl.when(k == 0)
    def _init():
        acc_ref[...] = jnp.zeros_like(acc_ref)

    # int8 {0,1} adjacency widened on the VPU (rides on slack); MXU matmul in the
    # compute dtype with f32 accumulation.
    a = a_ref[...].astype(z_ref.dtype)
    acc_ref[...] += jnp.dot(a, z_ref[...], preferred_element_type=jnp.float32)

    @pl.when(k == pl.num_programs(1) - 1)
    def _finalize():
        y = acc_ref[...] + b_ref[...]          # (1, OUT) broadcasts over node rows
        if apply_relu:
            y = jnp.maximum(y, 0.0)
        o_ref[...] = y.astype(o_ref.dtype)


def gcn_layer(adj_p, h_p, w, b, *, apply_relu, tm=512, tk=1024,
              compute_dtype=jnp.bfloat16):
    """One GCN layer on pre-padded inputs. Returns padded (n_pad, out_pad) h'."""
    n_pad, in_pad = h_p.shape
    _, in_dim, out_dim = w.shape
    out_pad = _round_up(out_dim, 128)

    # mean_k(H @ W_k) == H @ mean_k(W_k): fold the per-head loop into one matmul.
    w_mean = jnp.mean(w, axis=0)
    w_p = jnp.zeros((in_pad, out_pad), compute_dtype).at[:in_dim, :out_dim].set(
        w_mean.astype(compute_dtype))
    b_p = jnp.zeros((1, out_pad), jnp.float32).at[0, :out_dim].set(
        b.astype(jnp.float32))

    # Precompute Z = H @ W_mean once (f32 accumulation) outside the kernel; the
    # Pallas kernel is then a pure A @ Z accumulation.
    z_p = jnp.dot(h_p, w_p, preferred_element_type=jnp.float32).astype(compute_dtype)

    # tm capped so n_pad // tm >= 2 when possible (keep both v7x TCs busy).
    tm = _fit_tile(n_pad, min(tm, max(128, n_pad // 2)))
    tk = _fit_tile(n_pad, tk)
    grid = (n_pad // tm, n_pad // tk)

    z_isz = jnp.dtype(compute_dtype).itemsize
    flops = 2 * n_pad * n_pad * out_pad
    bytes_accessed = (
        n_pad * n_pad * 1                      # int8 adjacency, read exactly once
        + n_pad * out_pad * z_isz * grid[0]    # Z re-streamed per row block
        + out_pad * 4                          # bias (resident)
        + n_pad * out_pad * z_isz              # output writeback
    )

    # VMEM budget: double-buffered A / Z / out + f32 accumulator, with headroom;
    # capped at 48 MiB so it also fits v7x's 64 MiB per-TC VMEM.
    vmem_need = (3 * tm * tk * 1 + 3 * tk * out_pad * z_isz
                 + 2 * tm * out_pad * z_isz + tm * out_pad * 4 + 2 * out_pad * 4)
    vmem_limit = int(min(48 * 2 ** 20, max(32 * 2 ** 20, 2 * vmem_need)))

    kern = functools.partial(gcn_aggregate_kernel, apply_relu=apply_relu)
    return pl.pallas_call(
        kern,
        out_shape=jax.ShapeDtypeStruct((n_pad, out_pad), compute_dtype),
        grid_spec=pltpu.PrefetchScalarGridSpec(
            num_scalar_prefetch=0,
            grid=grid,
            in_specs=[
                # TODO(synk): add pipeline_mode=pl.Buffered(3) on the A spec if
                # profiling still shows exposed DMA after the larger tiles.
                pl.BlockSpec((tm, tk), lambda i, k: (i, k)),        # A tile (int8)
                pl.BlockSpec((tk, out_pad), lambda i, k: (k, 0)),   # Z rows of K block
                pl.BlockSpec((1, out_pad), lambda i, k: (0, 0)),    # bias (resident)
            ],
            out_specs=pl.BlockSpec((tm, out_pad), lambda i, k: (i, 0)),
            scratch_shapes=[pltpu.VMEM((tm, out_pad), jnp.float32)],
        ),
        compiler_params=pltpu.CompilerParams(
            dimension_semantics=("parallel", "arbitrary"),
            vmem_limit_bytes=vmem_limit,
        ),
        cost_estimate=pl.CostEstimate(
            flops=flops, transcendentals=0, bytes_accessed=bytes_accessed),
    )(adj_p, z_p, b_p)


def xavier_uniform(key, shape):
    """Matches nn.init.xavier_uniform_ for a (in_dim, out_dim) weight."""
    fan_in, fan_out = shape[-2], shape[-1]
    limit = (6.0 / (fan_in + fan_out)) ** 0.5
    return jax.random.uniform(key, shape, jnp.float32, -limit, limit)


def init_gcn_params(key, in_dim, hidden_dim, n_classes, n_layers, num_heads):
    """Layer dims mirror GCN.__init__: in->hidden, (n_layers-1)x hidden->hidden,
    hidden->n_classes."""
    dims = [(in_dim, hidden_dim)]
    dims += [(hidden_dim, hidden_dim)] * (n_layers - 1)
    dims += [(hidden_dim, n_classes)]
    params = []
    for (di, do) in dims:
        ws = []
        for _ in range(num_heads):
            key, sub = jax.random.split(key)
            ws.append(xavier_uniform(sub, (di, do)))
        params.append((jnp.stack(ws, axis=0), jnp.zeros((do,), jnp.float32)))
    return params


def gcn_forward(adj, features, params, *, tm=512, tk=1024,
                compute_dtype=jnp.bfloat16):
    """Full GCN forward: ReLU on every layer except the last (activation=None)."""
    n, in_dim = features.shape
    n_classes = params[-1][0].shape[-1]
    n_pad = _round_up(n, 128)
    in_pad = _round_up(in_dim, 128)

    # Pad/cast the adjacency ONCE (int8: values are exactly {0,1}) and reuse it
    # across all layers. Zero padded rows/cols keep padded h rows inert even
    # though later layers leave bias/ReLU values in them.
    adj_p = jnp.zeros((n_pad, n_pad), jnp.int8).at[:n, :n].set(adj.astype(jnp.int8))
    h_p = jnp.zeros((n_pad, in_pad), compute_dtype).at[:n, :in_dim].set(
        features.astype(compute_dtype))

    for i, (w, b) in enumerate(params):
        h_p = gcn_layer(adj_p, h_p, w, b, apply_relu=(i < len(params) - 1),
                        tm=tm, tk=tk, compute_dtype=compute_dtype)

    # Slice back and upcast only once, after the last layer.
    return h_p[:n, :n_classes].astype(jnp.float32)


if __name__ == "__main__":
    # Small deterministic problem (dropout = 0.0 -> no dropout branch).
    N_NODES, IN_DIM, HIDDEN_DIM, N_CLASSES = 256, 32, 64, 4
    N_LAYERS, NUM_HEADS = 2, 2          # -> total GCN layers = N_LAYERS + 1 = 3

    root = jax.random.PRNGKey(0)
    k_feat, k_adj, k_param = jax.random.split(root, 3)

    features = jax.random.normal(k_feat, (N_NODES, IN_DIM), jnp.float32)
    # Dense adjacency A[i, j] = 1 iff edge j -> i (copy_src + sum over in-edges),
    # with self-loops.
    adj = (jax.random.uniform(k_adj, (N_NODES, N_NODES)) < 0.05).astype(jnp.float32)
    adj = jnp.maximum(adj, jnp.eye(N_NODES, dtype=jnp.float32))

    params = init_gcn_params(k_param, IN_DIM, HIDDEN_DIM, N_CLASSES,
                             N_LAYERS, NUM_HEADS)

    # References.
    def ref_forward_bf16(adj, h, params):
        a16 = adj.astype(jnp.bfloat16)
        for i, (w, b) in enumerate(params):
            wm = jnp.mean(w, axis=0).astype(jnp.bfloat16)
            z = jnp.dot(h.astype(jnp.bfloat16), wm,
                        preferred_element_type=jnp.float32)
            y = jnp.dot(a16, z.astype(jnp.bfloat16),
                        preferred_element_type=jnp.float32) + b
            h = jnp.maximum(y, 0.0) if i < len(params) - 1 else y
        return h.astype(jnp.bfloat16).astype(jnp.float32)

    def ref_forward_f32(adj, h, params):
        for i, (w, b) in enumerate(params):
            y = adj @ (h @ jnp.mean(w, axis=0)) + b
            h = jnp.maximum(y, 0.0) if i < len(params) - 1 else y
        return h

    ref16 = ref_forward_bf16(adj, features, params)
    ref32 = ref_forward_f32(adj, features, params)

    # 1) Small tiles so the multi-block grid (2, 2) + accumulator path is exercised.
    out = jax.block_until_ready(
        gcn_forward(adj, features, params, tm=128, tk=128))
    assert out.shape == (N_NODES, N_CLASSES), out.shape
    assert jnp.allclose(out, ref16, atol=5e-2, rtol=5e-2), \
        float(jnp.max(jnp.abs(out - ref16)))

    # 2) Default (production) tile config, bf16 compute.
    out_def = jax.block_until_ready(gcn_forward(adj, features, params))
    assert jnp.allclose(out_def, ref16, atol=5e-2, rtol=5e-2), \
        float(jnp.max(jnp.abs(out_def - ref16)))

    # 3) Pure f32 path through the same kernel (tight check of the grid /
    #    accumulator / bias / ReLU structure).
    out_f32 = jax.block_until_ready(
        gcn_forward(adj, features, params, tm=128, tk=128,
                    compute_dtype=jnp.float32))
    assert jnp.allclose(out_f32, ref32, atol=2e-3, rtol=2e-3), \
        float(jnp.max(jnp.abs(out_f32 - ref32)))

    print("KERNEL_OK")
</pallas_src>

<mosaic_0001>
module attributes {stable_mosaic.version = 11 : i64} {
  func.func @gcn_aggregate_kernel(%arg0: i32, %arg1: i32, %arg2: memref<128x128xi8, #tpu.memory_space<vmem>>, %arg3: memref<128x128xbf16, #tpu.memory_space<vmem>>, %arg4: memref<1x128xf32, #tpu.memory_space<vmem>>, %arg5: memref<128x128xbf16, #tpu.memory_space<vmem>>, %arg6: memref<128x128xf32, #tpu.memory_space<vmem>>) attributes {dimension_semantics = [#tpu.dimension_semantics<parallel>, #tpu.dimension_semantics<arbitrary>], iteration_bounds = array<i64: 2, 2>, scalar_prefetch = 0 : i64, scratch_operands = 1 : i64, tpu.core_type = #tpu.core_type<tc>, window_params = [{transform_indices = @transform_0, window_bounds = array<i64: 128, 128>}, {transform_indices = @transform_1, window_bounds = array<i64: 128, 128>}, {pipeline_mode = #tpu.pipeline_mode<synchronous>, transform_indices = @transform_2, window_bounds = array<i64: 1, 128>}, {transform_indices = @transform_3, window_bounds = array<i64: 128, 128>}]} {
    %c0_i32 = arith.constant 0 : i32
    %0 = arith.cmpi eq, %arg1, %c0_i32 : i32
    %1 = arith.extui %0 : i1 to i32
    %c0_i32_0 = arith.constant 0 : i32
    %2 = arith.cmpi ne, %1, %c0_i32_0 : i32
    scf.if %2 {
      %cst_9 = arith.constant 0.000000e+00 : f32
      %13 = vector.broadcast %cst_9 : f32 to vector<128x128xf32>
      %c0_10 = arith.constant 0 : index
      %c0_11 = arith.constant 0 : index
      %14 = vector.load %arg6[%c0_10, %c0_11] : memref<128x128xf32, #tpu.memory_space<vmem>>, vector<128x128xf32>
      tpu.vector_store %arg6[%c0_10, %c0_11], %13 {strides = array<i32>} : memref<128x128xf32, #tpu.memory_space<vmem>>, vector<128x128xf32>,
    } else {
    }
    %c0 = arith.constant 0 : index
    %c0_1 = arith.constant 0 : index
    %3 = vector.load %arg2[%c0, %c0_1] : memref<128x128xi8, #tpu.memory_space<vmem>>, vector<128x128xi8>
    %4 = arith.sitofp %3 : vector<128x128xi8> to vector<128x128xbf16>
    %c0_2 = arith.constant 0 : index
    %c0_3 = arith.constant 0 : index
    %5 = vector.load %arg6[%c0_2, %c0_3] : memref<128x128xf32, #tpu.memory_space<vmem>>, vector<128x128xf32>
    %c0_4 = arith.constant 0 : index
    %c0_5 = arith.constant 0 : index
    %6 = vector.load %arg3[%c0_4, %c0_5] : memref<128x128xbf16, #tpu.memory_space<vmem>>, vector<128x128xbf16>
    %cst = arith.constant dense<0.000000e+00> : vector<128x128xf32>
    %7 = tpu.matmul %4, %6, %cst {dimension_numbers = #tpu.dot_dimension_numbers<[1], [0], [0], [1], [0, 0, 1, 1], [], []>} : vector<128x128xbf16>, vector<128x128xbf16>, vector<128x128xf32> -> vector<128x128xf32>
    %8 = arith.addf %5, %7 : vector<128x128xf32>
    %c0_6 = arith.constant 0 : index
    %c0_7 = arith.constant 0 : index
    %9 = vector.load %arg6[%c0_6, %c0_7] : memref<128x128xf32, #tpu.memory_space<vmem>>, vector<128x128xf32>
    tpu.vector_store %arg6[%c0_6, %c0_7], %8 {strides = array<i32>} : memref<128x128xf32, #tpu.memory_space<vmem>>, vector<128x128xf32>,
    %c1_i32 = arith.constant 1 : i32
    %10 = arith.cmpi eq, %arg1, %c1_i32 : i32
    %11 = arith.extui %10 : i1 to i32
    %c0_i32_8 = arith.constant 0 : i32
    %12 = arith.cmpi ne, %11, %c0_i32_8 : i32
    scf.if %12 {
      %c0_9 = arith.constant 0 : index
      %c0_10 = arith.constant 0 : index
      %13 = vector.load %arg6[%c0_9, %c0_10] : memref<128x128xf32, #tpu.memory_space<vmem>>, vector<128x128xf32>
      %c0_11 = arith.constant 0 : index
      %c0_12 = arith.constant 0 : index
      %14 = vector.load %arg4[%c0_11, %c0_12] : memref<1x128xf32, #tpu.memory_space<vmem>>, vector<1x128xf32>
      %15 = vector.broadcast %14 : vector<1x128xf32> to vector<128x128xf32>
      %16 = arith.addf %13, %15 : vector<128x128xf32>
      %cst_13 = arith.constant 0.000000e+00 : f32
      %17 = vector.broadcast %cst_13 : f32 to vector<128x128xf32>
      %18 = arith.maximumf %16, %17 : vector<128x128xf32>
      %19 = arith.truncf %18 : vector<128x128xf32> to vector<128x128xbf16>
      %c0_14 = arith.constant 0 : index
      %c0_15 = arith.constant 0 : index
      %20 = vector.load %arg5[%c0_14, %c0_15] : memref<128x128xbf16, #tpu.memory_space<vmem>>, vector<128x128xbf16>
      tpu.vector_store %arg5[%c0_14, %c0_15], %19 {strides = array<i32>} : memref<128x128xbf16, #tpu.memory_space<vmem>>, vector<128x128xbf16>,
    } else {
    }
    return
  }
  func.func @transform_0(%arg0: i32, %arg1: i32) -> (i32, i32) {
    %c0_i32 = arith.constant 0 : i32
    return %arg0, %arg1 : i32, i32
  }
  func.func @transform_1(%arg0: i32, %arg1: i32) -> (i32, i32) {
    %c0_i32 = arith.constant 0 : i32
    %c0_i32_0 = arith.constant 0 : i32
    return %arg1, %c0_i32 : i32, i32
  }
  func.func @transform_2(%arg0: i32, %arg1: i32) -> (i32, i32) {
    %c0_i32 = arith.constant 0 : i32
    %c0_i32_0 = arith.constant 0 : i32
    %c0_i32_1 = arith.constant 0 : i32
    return %c0_i32, %c0_i32_0 : i32, i32
  }
  func.func @transform_3(%arg0: i32, %arg1: i32) -> (i32, i32) {
    %c0_i32 = arith.constant 0 : i32
    %c0_i32_0 = arith.constant 0 : i32
    return %arg0, %c0_i32 : i32, i32
  }
}

</mosaic_0001>

<llo_original>
// kernel: tpu_custom_call.1
$region0: #{tpu_custom_call.1}
  #allocation0 [shape = 'u32[]', space=smem, size = 0x4, offset = 0x4, fixed_abs, tag = 'smem constant byte address 0x4 - core index']
  #allocation1 [shape = 'u32[72,128]{1,0:T(1,128)}', space=vmem, size = 0x9000, scoped, tag = 'internal scratch']
  #allocation2 [shape = 'f32[128,128]{1,0:T(8,128)}', space=vmem, size = 0x10000, scoped, tag = 'scratch operand']
  %s0 = inlined_call_operand.hbm [shape: s8[256,256], index: 0, kind: input, shape index: {}]
  %s1 = inlined_call_operand.hbm [shape: bf16[256,128], index: 1, kind: input, shape index: {}]
  %s2 = inlined_call_operand.vmem [shape: f32[1,128], index: 2, kind: input, shape index: {}]
  %s3 = inlined_call_operand.hbm [shape: bf16[256,128], index: 3, kind: output, shape index: {}]
  %s4 = sld [smem:[#allocation0]]
  $region61: #{tpu_custom_call.1} parent=0
    _
  %s6 = ssub.s32 1, %s4
  %s7 = scalar_select 0, %s6, %s4
  $region1: #{tpu_custom_call.1} parent=0
    #allocation3 [shape = 'u8[32768]{0}', space=vmem, size = 0x8000, scoped, tag = 'input window, operand 0']
    #allocation4 [shape = 's32[2]{0}', space=sflag, size = 0x8, scoped, tag = 'scoped memory for tpu_custom_call.1']
    #allocation5 [shape = 's32[2]{0}', space=sflag, size = 0x8, scoped, tag = 'scoped memory for tpu_custom_call.1']
    #allocation6 [shape = 'u8[65536]{0}', space=vmem, size = 0x10000, scoped, tag = 'input window, operand 1']
    #allocation7 [shape = 's32[2]{0}', space=sflag, size = 0x8, scoped, tag = 'scoped memory for tpu_custom_call.1']
    #allocation8 [shape = 'u8[65536]{0}', space=vmem, size = 0x10000, scoped, tag = 'output window, operand 0']
    %8 = vsyncpa [#allocation4], 0
    %s9 = scalar_lea.sflag [#allocation4], 1
    %10 = vsyncpa %s9, 0
    %11 = vsyncpa [#allocation7], 0
    %s12 = scalar_lea.sflag [#allocation7], 1
    %13 = vsyncpa %s12, 0
    %14 = vsyncpa [#allocation5], 0
    %s15 = scalar_lea.sflag [#allocation5], 1
    %16 = vsyncpa %s15, 0
    loop: start=0, step=1, limit=6
    $region2: #{tpu_custom_call.1} parent=1 // loop_pre_header
      _
    $region3: #{tpu_custom_call.1} parent=1 // loop_header
      %s18 = sphi 0, %s22
      %p19 = scmp.ge.s32.totalorder %s18, 6
      %s25 = sphi 0, %s37
      %s26 = sphi 0, %s33
      %s27 = sphi 0, %s25
      %s28 = sphi 0, %s26
      %s29 = sphi 0, %s27
      %s30 = sphi 0, %s28
      %s42 = sphi 0, %s44
      %s45 = sphi 0, %s42
      %s46 = sphi 0, %s45
      %s62 = sphi 0, %s46
      %s68 = sphi 0, %s70
      %s71 = sphi 0, %s68
      %s72 = sphi 0, %s71
      %s88 = sphi 0, %s72
      %s92 = sphi 0, %s92
      %s94 = sphi 0, %s92
      %s95 = sphi 0, %s94
      %s109 = sphi 0, %s95
      %s115 = sphi 0, %s117
      %s118 = sphi 0, %s115
      %s119 = sphi 0, %s118
      %s135 = sphi 0, %s119
    $region4: #{tpu_custom_call.1} parent=1 // loop_header_branch
      %21 = sbr.rel (%p19) target = $region8
    $region5: #{tpu_custom_call.1} parent=1 // loop_body
      %s23 = ssub.s32 %s18, 1
      %s24 = ssub.s32 %s18, 2
      %s31 = sadd.s32 1, %s26
      %p32 = scmp.ge.s32.totalorder %s31, 2
      %s33 = scalar_select %p32, 0, %s31
      %s34 = sadd.s32 1, %s25
      %s35 = scalar_select %p32, %s34, %s25
      %p36 = scmp.ge.s32.totalorder %s35, 2
      %s37 = scalar_select %p36, 0, %s35
      %s38 = ssub.s32 %s25, %s37
      %s39 = ssub.s32 %s26, %s33
      %s40 = sor.u32 %s38, %s39
      %p41 = scmp.eq.s32.totalorder %s40, 0
      %s43 = sadd.s32 %s42, 1
      %s44 = scalar_select %p41, %s42, %s43
      %p47 = pneg %p41
      %p48 = scmp.eq.s32.totalorder %s18, 3
      %p49 = por %p47, %p48
      %p50 = scmp.ne.s32.totalorder %s42, %s45
      %p51 = scmp.eq.s32.totalorder %s18, 0
      %p52 = por %p50, %p51
      %p53 = scmp.ne.s32.totalorder %s42, %s45
      %p54 = scmp.eq.s32.totalorder %s23, 3
      %p55 = por %p53, %p54
      %p56 = scmp.ne.s32.totalorder %s45, %s46
      %p57 = scmp.eq.s32.totalorder %s23, 0
      %p58 = por %p56, %p57
      %p59 = scmp.ne.s32.totalorder %s45, %s46
      %p60 = scmp.eq.s32.totalorder %s24, 3
      %p61 = por %p59, %p60
      %p63 = scmp.ne.s32.totalorder %s46, %s62
      %p64 = scmp.eq.s32.totalorder %s24, 0
      %p65 = por %p63, %p64
      %s66 = ssub.s32 %s26, %s33
      %p67 = scmp.eq.s32.totalorder %s66, 0
      %s69 = sadd.s32 %s68, 1
      %s70 = scalar_select %p67, %s68, %s69
      %p73 = pneg %p67
      %p74 = scmp.eq.s32.totalorder %s18, 3
      %p75 = por %p73, %p74
      %p76 = scmp.ne.s32.totalorder %s68, %s71
      %p77 = scmp.eq.s32.totalorder %s18, 0
      %p78 = por %p76, %p77
      %p79 = scmp.ne.s32.totalorder %s68, %s71
      %p80 = scmp.eq.s32.totalorder %s23, 3
      %p81 = por %p79, %p80
      %p82 = scmp.ne.s32.totalorder %s71, %s72
      %p83 = scmp.eq.s32.totalorder %s23, 0
      %p84 = por %p82, %p83
      %p85 = scmp.ne.s32.totalorder %s71, %s72
      %p86 = scmp.eq.s32.totalorder %s24, 3
      %p87 = por %p85, %p86
      %p89 = scmp.ne.s32.totalorder %s72, %s88
      %p90 = scmp.eq.s32.totalorder %s24, 0
      %p91 = por %p89, %p90
      %s93 = sadd.s32 %s92, 1
      %p96 = scmp.eq.s32.totalorder %s18, 3
      %p97 = scmp.ne.s32.totalorder %s92, %s94
      %p98 = scmp.eq.s32.totalorder %s18, 0
      %p99 = por %p97, %p98
      %p100 = scmp.ne.s32.totalorder %s92, %s94
      %p101 = scmp.eq.s32.totalorder %s23, 3
      %p102 = por %p100, %p101
      %p103 = scmp.ne.s32.totalorder %s94, %s95
      %p104 = scmp.eq.s32.totalorder %s23, 0
      %p105 = por %p103, %p104
      %p106 = scmp.ne.s32.totalorder %s94, %s95
      %p107 = scmp.eq.s32.totalorder %s24, 3
      %p108 = por %p106, %p107
      %p110 = scmp.ne.s32.totalorder %s95, %s109
      %p111 = scmp.eq.s32.totalorder %s24, 0
      %p112 = por %p110, %p111
      %s113 = ssub.s32 %s25, %s37
      %p114 = scmp.eq.s32.totalorder %s113, 0
      %s116 = sadd.s32 %s115, 1
      %s117 = scalar_select %p114, %s115, %s116
      %p120 = pneg %p114
      %p121 = scmp.eq.s32.totalorder %s18, 3
      %p122 = por %p120, %p121
      %p123 = scmp.ne.s32.totalorder %s115, %s118
      %p124 = scmp.eq.s32.totalorder %s18, 0
      %p125 = por %p123, %p124
      %p126 = scmp.ne.s32.totalorder %s115, %s118
      %p127 = scmp.eq.s32.totalorder %s23, 3
      %p128 = por %p126, %p127
      %p129 = scmp.ne.s32.totalorder %s118, %s119
      %p130 = scmp.eq.s32.totalorder %s23, 0
      %p131 = por %p129, %p130
      %p132 = scmp.ne.s32.totalorder %s118, %s119
      %p133 = scmp.eq.s32.totalorder %s24, 3
      %p134 = por %p132, %p133
      %p136 = scmp.ne.s32.totalorder %s119, %s135
      %p137 = scmp.eq.s32.totalorder %s24, 0
      %p138 = por %p136, %p137
      %p139 = scmp.le.s32.totalorder 1, %s18
      %p140 = scmp.lt.s32.totalorder %s18, 5
      %p141 = pnand %p139, %p140
      %p142 = pneg %p141
      // Predicated region
      $region9: #{tpu_custom_call.1} parent=5 // pred_check
        _
      $region10: #{tpu_custom_call.1} parent=5 // pred_check_branch
        %144 = sbr.rel (%p141) target = $region12
      $region11: #{tpu_custom_call.1} parent=5 // pred_region
        %s145 = ssub.s32 %s18, 1
        // Predicated region
        $region13: #{tpu_custom_call.1} parent=11 // pred_check
          %p146 = pneg %p105
        $region14: #{tpu_custom_call.1} parent=11 // pred_check_branch
          %148 = sbr.rel (%p146) target = $region16
        $region15: #{tpu_custom_call.1} parent=11 // pred_region
          _
        $region16: #{tpu_custom_call.1} parent=11 // pred_fallthru
          _
      $region12: #{tpu_custom_call.1} parent=5 // pred_fallthru
        _
      %p149 = scmp.lt.s32.totalorder %s18, 4
      // Predicated region
      $region17: #{tpu_custom_call.1} parent=5 // pred_check
        %p150 = pneg %p149
      $region18: #{tpu_custom_call.1} parent=5 // pred_check_branch
        %152 = sbr.rel (%p150) target = $region20
      $region19: #{tpu_custom_call.1} parent=5 // pred_region
        // Predicated region
        $region21: #{tpu_custom_call.1} parent=19 // pred_check
          %p153 = pneg %p52
        $region22: #{tpu_custom_call.1} parent=19 // pred_check_branch
          %155 = sbr.rel (%p153) target = $region24
        $region23: #{tpu_custom_call.1} parent=19 // pred_region
          %s156 = sand.u32 %s42, 1
          %s157 = scalar_lea.sflag [#allocation4], %s156
          %s158 = sand.u32 %s42, 1
          %s159 = smul.addr %s158, 32
          %s160 = scalar_lea.vmem [#allocation3], %s159
          %s161 = smul.u32 4, %s25
          %163 = vsyncadd %s157, 0
          %s164 = smul.addr %s161, 2
          %s165 = sadd.s32 %s26, %s164
          %s166 = smul.addr %s165, 8
          %s167 = scalar_lea.hbm %s0, %s166
          %s168 = sshll.u32 %s167, 4
          %s169 = int_to_ptr.hbm [resolvable:$true] %s168
          %s170 = sshll.u32 %s160, 4
          %s171 = int_to_ptr.vmem [resolvable:$true] %s170
          %176 = dma.hbm_to_vmem [thread:$0]  %s169, 512, %s171, %s157, 256, 128, 8
        $region24: #{tpu_custom_call.1} parent=19 // pred_fallthru
          _
        // Predicated region
        $region25: #{tpu_custom_call.1} parent=19 // pred_check
          %p177 = pneg %p78
        $region26: #{tpu_custom_call.1} parent=19 // pred_check_branch
          %179 = sbr.rel (%p177) target = $region28
        $region27: #{tpu_custom_call.1} parent=19 // pred_region
          %s180 = sand.u32 %s68, 1
          %s181 = scalar_lea.sflag [#allocation7], %s180
          %s182 = sand.u32 %s68, 1
          %s183 = smul.addr %s182, 64
          %s184 = scalar_lea.vmem [#allocation6], %s183
          %s185 = smul.u32 16, %s26
          %187 = vsyncadd %s181, 0
          %s188 = smul.addr %s185, 4
          %s189 = scalar_lea.hbm %s1, %s188
          %s190 = sshll.u32 %s189, 4
          %s191 = int_to_ptr.hbm [resolvable:$true] %s190
          %s192 = sshll.u32 %s184, 4
          %s193 = int_to_ptr.vmem [resolvable:$true] %s192
          %198 = dma.hbm_to_vmem [thread:$0]  %s191, 1024, %s193, %s181, 64, 64, 4
        $region28: #{tpu_custom_call.1} parent=19 // pred_fallthru
          _
      $region20: #{tpu_custom_call.1} parent=5 // pred_fallthru
        _
      %p199 = scmp.le.s32.totalorder 1, %s18
      %p200 = scmp.lt.s32.totalorder %s18, 5
      %p201 = pnand %p199, %p200
      %p202 = pneg %p201
      // Predicated region
      $region29: #{tpu_custom_call.1} parent=5 // pred_check
        _
      $region30: #{tpu_custom_call.1} parent=5 // pred_check_branch
        %204 = sbr.rel (%p201) target = $region32
      $region31: #{tpu_custom_call.1} parent=5 // pred_region
        %s205 = ssub.s32 %s18, 1
        %s206 = sand.u32 %s45, 1
        %s207 = scalar_lea.sflag [#allocation4], %s206
        %s208 = sand.u32 %s45, 1
        %s209 = smul.addr %s208, 32
        %s210 = scalar_lea.vmem [#allocation3], %s209
        // Predicated region
        $region33: #{tpu_custom_call.1} parent=31 // pred_check
          %p211 = pneg %p58
        $region34: #{tpu_custom_call.1} parent=31 // pred_check_branch
          %213 = sbr.rel (%p211) target = $region36
        $region35: #{tpu_custom_call.1} parent=31 // pred_region
          %215 = dma.done %s207, 512
        $region36: #{tpu_custom_call.1} parent=31 // pred_fallthru
          _
        %s216 = sand.u32 %s71, 1
        %s217 = scalar_lea.sflag [#allocation7], %s216
        %s218 = sand.u32 %s71, 1
        %s219 = smul.addr %s218, 64
        %s220 = scalar_lea.vmem [#allocation6], %s219
        // Predicated region
        $region37: #{tpu_custom_call.1} parent=31 // pred_check
          %p221 = pneg %p84
        $region38: #{tpu_custom_call.1} parent=31 // pred_check_branch
          %223 = sbr.rel (%p221) target = $region40
        $region39: #{tpu_custom_call.1} parent=31 // pred_region
          %225 = dma.done %s217, 1024
        $region40: #{tpu_custom_call.1} parent=31 // pred_fallthru
          _
        %s226 = sand.u32 %s45, 1
        %s227 = scalar_lea.sflag [#allocation4], %s226
        %s228 = sand.u32 %s45, 1
        %s229 = smul.addr %s228, 32
        %s230 = scalar_lea.vmem [#allocation3], %s229
        %p231 = pneg %p58
        %p232 = pneg %p55
        %s233 = sand.u32 %s71, 1
        %s234 = scalar_lea.sflag [#allocation7], %s233
        %s235 = sand.u32 %s71, 1
        %s236 = smul.addr %s235, 64
        %s237 = scalar_lea.vmem [#allocation6], %s236
        %p238 = pneg %p84
        %p239 = pneg %p81
        %p240 = pneg %p105
        %p241 = pneg %p102
        %p242 = pneg %p131
        %p243 = pneg %p128
        %s244 = sand.u32 %s118, 1
        %s245 = scalar_lea.sflag [#allocation5], %s244
        %s246 = sand.u32 %s118, 1
        %s247 = smul.addr %s246, 64
        %s248 = scalar_lea.vmem [#allocation8], %s247
        %s249 = smul.u32 4, %s27
        %s250 = smul.u32 16, %s28
        %s251 = smul.u32 16, %s27
        %p252 = scmp.eq.s32.totalorder %s28, 0
        // Predicated region
        $region41: #{tpu_custom_call.1} parent=31 // pred_check
          %p253 = pneg %p252
        $region42: #{tpu_custom_call.1} parent=31 // pred_check_branch
          %255 = sbr.rel (%p253) target = $region44
        $region43: #{tpu_custom_call.1} parent=31 // pred_region
          %256 = vst [vmem:[#allocation2] sm:$0xff] 0.0
          %257 = vst [vmem:[#allocation2 + $0x8] sm:$0xff] 0.0
          %258 = vst [vmem:[#allocation2 + $0x10] sm:$0xff] 0.0
          %259 = vst [vmem:[#allocation2 + $0x18] sm:$0xff] 0.0
          %260 = vst [vmem:[#allocation2 + $0x20] sm:$0xff] 0.0
          %261 = vst [vmem:[#allocation2 + $0x28] sm:$0xff] 0.0
          %262 = vst [vmem:[#allocation2 + $0x30] sm:$0xff] 0.0
          %263 = vst [vmem:[#allocation2 + $0x38] sm:$0xff] 0.0
          %264 = vst [vmem:[#allocation2 + $0x40] sm:$0xff] 0.0
          %265 = vst [vmem:[#allocation2 + $0x48] sm:$0xff] 0.0
          %266 = vst [vmem:[#allocation2 + $0x50] sm:$0xff] 0.0
          %267 = vst [vmem:[#allocation2 + $0x58] sm:$0xff] 0.0
          %268 = vst [vmem:[#allocation2 + $0x60] sm:$0xff] 0.0
          %269 = vst [vmem:[#allocation2 + $0x68] sm:$0xff] 0.0
          %270 = vst [vmem:[#allocation2 + $0x70] sm:$0xff] 0.0
          %271 = vst [vmem:[#allocation2 + $0x78] sm:$0xff] 0.0
        $region44: #{tpu_custom_call.1} parent=31 // pred_fallthru
          _
        %v272 = vld [vmem:[%s210] sm:$0xff]
        %v273 = vld [vmem:[%s210 + $0x8] sm:$0xff]
        %v274 = vld [vmem:[%s210 + $0x10] sm:$0xff]
        %v275 = vld [vmem:[%s210 + $0x18] sm:$0xff]
        %v276 = vunpack.c.0.s8 %v272
        %v277 = vunpack.c.1.s8 %v272
        %v278 = vunpack.c.2.s8 %v272
        %v279 = vunpack.c.3.s8 %v272
        %v280 = vunpack.c.0.s8 %v273
        %v281 = vunpack.c.1.s8 %v273
        %v282 = vunpack.c.2.s8 %v273
        %v283 = vunpack.c.3.s8 %v273
        %v284 = vunpack.c.0.s8 %v274
        %v285 = vunpack.c.1.s8 %v274
        %v286 = vunpack.c.2.s8 %v274
        %v287 = vunpack.c.3.s8 %v274
        %v288 = vunpack.c.0.s8 %v275
        %v289 = vunpack.c.1.s8 %v275
        %v290 = vunpack.c.2.s8 %v275
        %v291 = vunpack.c.3.s8 %v275
        %v292 = vcvt.s32.f32 %v276
        %v293 = vcvt.s32.f32 %v277
        %v294 = vcvt.s32.f32 %v278
        %v295 = vcvt.s32.f32 %v279
        %v296 = vcvt.s32.f32 %v280
        %v297 = vcvt.s32.f32 %v281
        %v298 = vcvt.s32.f32 %v282
        %v299 = vcvt.s32.f32 %v283
        %v300 = vcvt.s32.f32 %v284
        %v301 = vcvt.s32.f32 %v285
        %v302 = vcvt.s32.f32 %v286
        %v303 = vcvt.s32.f32 %v287
        %v304 = vcvt.s32.f32 %v288
        %v305 = vcvt.s32.f32 %v289
        %v306 = vcvt.s32.f32 %v290
        %v307 = vcvt.s32.f32 %v291
        %v308 = vpack.c.bf16 %v293, %v292
        %v309 = vpack.c.bf16 %v295, %v294
        %v310 = vpack.c.bf16 %v297, %v296
        %v311 = vpack.c.bf16 %v299, %v298
        %v312 = vpack.c.bf16 %v301, %v300
        %v313 = vpack.c.bf16 %v303, %v302
        %v314 = vpack.c.bf16 %v305, %v304
        %v315 = vpack.c.bf16 %v307, %v306
        %v316 = vld [vmem:[#allocation2] sm:$0xff]
        %v317 = vld [vmem:[#allocation2 + $0x8] sm:$0xff]
        %v318 = vld [vmem:[#allocation2 + $0x10] sm:$0xff]
        %v319 = vld [vmem:[#allocation2 + $0x18] sm:$0xff]
        %v320 = vld [vmem:[#allocation2 + $0x20] sm:$0xff]
        %v321 = vld [vmem:[#allocation2 + $0x28] sm:$0xff]
        %v322 = vld [vmem:[#allocation2 + $0x30] sm:$0xff]
        %v323 = vld [vmem:[#allocation2 + $0x38] sm:$0xff]
        %v324 = vld [vmem:[#allocation2 + $0x40] sm:$0xff]
        %v325 = vld [vmem:[#allocation2 + $0x48] sm:$0xff]
        %v326 = vld [vmem:[#allocation2 + $0x50] sm:$0xff]
        %v327 = vld [vmem:[#allocation2 + $0x58] sm:$0xff]
        %v328 = vld [vmem:[#allocation2 + $0x60] sm:$0xff]
        %v329 = vld [vmem:[#allocation2 + $0x68] sm:$0xff]
        %v330 = vld [vmem:[#allocation2 + $0x70] sm:$0xff]
        %v331 = vld [vmem:[#allocation2 + $0x78] sm:$0xff]
        %v332 = vld [vmem:[%s220] sm:$0xf]
        %v333 = vld [vmem:[%s220 + $0x4] sm:$0xf]
        %v334 = vld [vmem:[%s220 + $0x8] sm:$0xf]
        %v335 = vld [vmem:[%s220 + $0xc] sm:$0xf]
        %v336 = vld [vmem:[%s220 + $0x10] sm:$0xf]
        %v337 = vld [vmem:[%s220 + $0x14] sm:$0xf]
        %v338 = vld [vmem:[%s220 + $0x18] sm:$0xf]
        %v339 = vld [vmem:[%s220 + $0x1c] sm:$0xf]
        %v340 = vld [vmem:[%s220 + $0x20] sm:$0xf]
        %v341 = vld [vmem:[%s220 + $0x24] sm:$0xf]
        %v342 = vld [vmem:[%s220 + $0x28] sm:$0xf]
        %v343 = vld [vmem:[%s220 + $0x2c] sm:$0xf]
        %v344 = vld [vmem:[%s220 + $0x30] sm:$0xf]
        %v345 = vld [vmem:[%s220 + $0x34] sm:$0xf]
        %v346 = vld [vmem:[%s220 + $0x38] sm:$0xf]
        %v347 = vld [vmem:[%s220 + $0x3c] sm:$0xf]
        %v364 = vunpack.c.l.b16 %v332
        %v365 = vunpack.c.l.b16 %v333
        %v366 = vunpack.c.l.b16 %v334
        %v367 = vunpack.c.l.b16 %v335
        %v368 = vunpack.c.l.b16 %v336
        %v369 = vunpack.c.l.b16 %v337
        %v370 = vunpack.c.l.b16 %v338
        %v371 = vunpack.c.l.b16 %v339
        %v372 = vunpack.c.l.b16 %v340
        %v373 = vunpack.c.l.b16 %v341
        %v374 = vunpack.c.l.b16 %v342
        %v375 = vunpack.c.l.b16 %v343
        %v376 = vunpack.c.l.b16 %v344
        %v377 = vunpack.c.l.b16 %v345
        %v378 = vunpack.c.l.b16 %v346
        %v379 = vunpack.c.l.b16 %v347
        %v380 = vpack.c.b16 %v365, %v364
        %v381 = vpack.c.b16 %v367, %v366
        %v382 = vpack.c.b16 %v369, %v368
        %v383 = vpack.c.b16 %v371, %v370
        %v384 = vpack.c.b16 %v373, %v372
        %v385 = vpack.c.b16 %v375, %v374
        %v386 = vpack.c.b16 %v377, %v376
        %v387 = vpack.c.b16 %v379, %v378
        %396 = vmatpush.bf16.msra.mxu0 %v387
        %397 = vmatpush.bf16.msra.mxu0 %v386
        %398 = vmatpush.bf16.msra.mxu0 %v385
        %399 = vmatpush.bf16.msra.mxu0 %v384
        %400 = vmatpush.bf16.msra.mxu0 %v383
        %401 = vmatpush.bf16.msra.mxu0 %v382
        %402 = vmatpush.bf16.msra.mxu0 %v381
        %403 = vmatpush.bf16.msra.mxu0 %v380
        %404 = vmatmul.bf16.gmra.mxu0 %v308
        %v405 = vpop.f32.mrf.mxu0
        %v406 = vadd.f32 0.0, %v405
        %v407 = vpop.f32.mrf.mxu0
        %v408 = vadd.f32 0.0, %v407
        %409 = vmatmul.bf16.gmra.mxu0 %v309
        %v410 = vpop.f32.mrf.mxu0
        %v411 = vadd.f32 0.0, %v410
        %v412 = vpop.f32.mrf.mxu0
        %v413 = vadd.f32 0.0, %v412
        %414 = vmatmul.bf16.gmra.mxu0 %v310
        %v415 = vpop.f32.mrf.mxu0
        %v416 = vadd.f32 0.0, %v415
        %v417 = vpop.f32.mrf.mxu0
        %v418 = vadd.f32 0.0, %v417
        %419 = vmatmul.bf16.gmra.mxu0 %v311
        %v420 = vpop.f32.mrf.mxu0
        %v421 = vadd.f32 0.0, %v420
        %v422 = vpop.f32.mrf.mxu0
        %v423 = vadd.f32 0.0, %v422
        %424 = vmatmul.bf16.gmra.mxu0 %v312
        %v425 = vpop.f32.mrf.mxu0
        %v426 = vadd.f32 0.0, %v425
        %v427 = vpop.f32.mrf.mxu0
        %v428 = vadd.f32 0.0, %v427
        %429 = vmatmul.bf16.gmra.mxu0 %v313
        %v430 = vpop.f32.mrf.mxu0
        %v431 = vadd.f32 0.0, %v430
        %v432 = vpop.f32.mrf.mxu0
        %v433 = vadd.f32 0.0, %v432
        %434 = vmatmul.bf16.gmra.mxu0 %v314
        %v435 = vpop.f32.mrf.mxu0
        %v436 = vadd.f32 0.0, %v435
        %v437 = vpop.f32.mrf.mxu0
        %v438 = vadd.f32 0.0, %v437
        %439 = vmatmul.bf16.gmra.mxu0 %v315
        %v440 = vpop.f32.mrf.mxu0
        %v441 = vadd.f32 0.0, %v440
        %v442 = vpop.f32.mrf.mxu0
        %v443 = vadd.f32 0.0, %v442
        %444 = vdwg.mxu0
        %v445 = vadd.f32 %v316, %v406
        %v446 = vadd.f32 %v317, %v408
        %v447 = vadd.f32 %v318, %v411
        %v448 = vadd.f32 %v319, %v413
        %v449 = vadd.f32 %v320, %v416
        %v450 = vadd.f32 %v321, %v418
        %v451 = vadd.f32 %v322, %v421
        %v452 = vadd.f32 %v323, %v423
        %v453 = vadd.f32 %v324, %v426
        %v454 = vadd.f32 %v325, %v428
        %v455 = vadd.f32 %v326, %v431
        %v456 = vadd.f32 %v327, %v433
        %v457 = vadd.f32 %v328, %v436
        %v458 = vadd.f32 %v329, %v438
        %v459 = vadd.f32 %v330, %v441
        %v460 = vadd.f32 %v331, %v443
        %461 = vst [vmem:[#allocation2] sm:$0xff] %v445
        %462 = vst [vmem:[#allocation2 + $0x8] sm:$0xff] %v446
        %463 = vst [vmem:[#allocation2 + $0x10] sm:$0xff] %v447
        %464 = vst [vmem:[#allocation2 + $0x18] sm:$0xff] %v448
        %465 = vst [vmem:[#allocation2 + $0x20] sm:$0xff] %v449
        %466 = vst [vmem:[#allocation2 + $0x28] sm:$0xff] %v450
        %467 = vst [vmem:[#allocation2 + $0x30] sm:$0xff] %v451
        %468 = vst [vmem:[#allocation2 + $0x38] sm:$0xff] %v452
        %469 = vst [vmem:[#allocation2 + $0x40] sm:$0xff] %v453
        %470 = vst [vmem:[#allocation2 + $0x48] sm:$0xff] %v454
        %471 = vst [vmem:[#allocation2 + $0x50] sm:$0xff] %v455
        %472 = vst [vmem:[#allocation2 + $0x58] sm:$0xff] %v456
        %473 = vst [vmem:[#allocation2 + $0x60] sm:$0xff] %v457
        %474 = vst [vmem:[#allocation2 + $0x68] sm:$0xff] %v458
        %475 = vst [vmem:[#allocation2 + $0x70] sm:$0xff] %v459
        %476 = vst [vmem:[#allocation2 + $0x78] sm:$0xff] %v460
        %p477 = scmp.eq.s32.totalorder %s28, 1
        // Predicated region
        $region45: #{tpu_custom_call.1} parent=31 // pred_check
          %p478 = pneg %p477
        $region46: #{tpu_custom_call.1} parent=31 // pred_check_branch
          %480 = sbr.rel (%p478) target = $region48
        $region47: #{tpu_custom_call.1} parent=31 // pred_region
          %v481 = vld [vmem:[#allocation2] sm:$0xff]
          %v482 = vld [vmem:[#allocation2 + $0x8] sm:$0xff]
          %v483 = vld [vmem:[#allocation2 + $0x10] sm:$0xff]
          %v484 = vld [vmem:[#allocation2 + $0x18] sm:$0xff]
          %v485 = vld [vmem:[#allocation2 + $0x20] sm:$0xff]
          %v486 = vld [vmem:[#allocation2 + $0x28] sm:$0xff]
          %v487 = vld [vmem:[#allocation2 + $0x30] sm:$0xff]
          %v488 = vld [vmem:[#allocation2 + $0x38] sm:$0xff]
          %v489 = vld [vmem:[#allocation2 + $0x40] sm:$0xff]
          %v490 = vld [vmem:[#allocation2 + $0x48] sm:$0xff]
          %v491 = vld [vmem:[#allocation2 + $0x50] sm:$0xff]
          %v492 = vld [vmem:[#allocation2 + $0x58] sm:$0xff]
          %v493 = vld [vmem:[#allocation2 + $0x60] sm:$0xff]
          %v494 = vld [vmem:[#allocation2 + $0x68] sm:$0xff]
          %v495 = vld [vmem:[#allocation2 + $0x70] sm:$0xff]
          %v496 = vld [vmem:[#allocation2 + $0x78] sm:$0xff]
          %v497 = vld [vmem:[%s2] sm:$0x1]
          %v499 = vperm.slane %v497, 0
          %v501 = vadd.f32 %v481, %v499
          %v502 = vadd.f32 %v482, %v499
          %v503 = vadd.f32 %v483, %v499
          %v504 = vadd.f32 %v484, %v499
          %v505 = vadd.f32 %v485, %v499
          %v506 = vadd.f32 %v486, %v499
          %v507 = vadd.f32 %v487, %v499
          %v508 = vadd.f32 %v488, %v499
          %v509 = vadd.f32 %v489, %v499
          %v510 = vadd.f32 %v490, %v499
          %v511 = vadd.f32 %v491, %v499
          %v512 = vadd.f32 %v492, %v499
          %v513 = vadd.f32 %v493, %v499
          %v514 = vadd.f32 %v494, %v499
          %v515 = vadd.f32 %v495, %v499
          %v516 = vadd.f32 %v496, %v499
          %v517 = vmax.f32 %v501, 0.0
          %v518 = vmax.f32 %v502, 0.0
          %v519 = vmax.f32 %v503, 0.0
          %v520 = vmax.f32 %v504, 0.0
          %v521 = vmax.f32 %v505, 0.0
          %v522 = vmax.f32 %v506, 0.0
          %v523 = vmax.f32 %v507, 0.0
          %v524 = vmax.f32 %v508, 0.0
          %v525 = vmax.f32 %v509, 0.0
          %v526 = vmax.f32 %v510, 0.0
          %v527 = vmax.f32 %v511, 0.0
          %v528 = vmax.f32 %v512, 0.0
          %v529 = vmax.f32 %v513, 0.0
          %v530 = vmax.f32 %v514, 0.0
          %v531 = vmax.f32 %v515, 0.0
          %v532 = vmax.f32 %v516, 0.0
          %v533 = vpack.c.bf16 %v517, %v517
          %v534 = vpack.c.bf16 %v518, %v518
          %v535 = vpack.c.bf16 %v519, %v519
          %v536 = vpack.c.bf16 %v520, %v520
          %v537 = vpack.c.bf16 %v521, %v521
          %v538 = vpack.c.bf16 %v522, %v522
          %v539 = vpack.c.bf16 %v523, %v523
          %v540 = vpack.c.bf16 %v524, %v524
          %v541 = vpack.c.bf16 %v525, %v525
          %v542 = vpack.c.bf16 %v526, %v526
          %v543 = vpack.c.bf16 %v527, %v527
          %v544 = vpack.c.bf16 %v528, %v528
          %v545 = vpack.c.bf16 %v529, %v529
          %v546 = vpack.c.bf16 %v530, %v530
          %v547 = vpack.c.bf16 %v531, %v531
          %v548 = vpack.c.bf16 %v532, %v532
          %549 = vst [vmem:[%s248] sm:$0xf] %v533
          %550 = vst [vmem:[%s248 + $0x4] sm:$0xf] %v534
          %551 = vst [vmem:[%s248 + $0x8] sm:$0xf] %v535
          %552 = vst [vmem:[%s248 + $0xc] sm:$0xf] %v536
          %553 = vst [vmem:[%s248 + $0x10] sm:$0xf] %v537
          %554 = vst [vmem:[%s248 + $0x14] sm:$0xf] %v538
          %555 = vst [vmem:[%s248 + $0x18] sm:$0xf] %v539
          %556 = vst [vmem:[%s248 + $0x1c] sm:$0xf] %v540
          %557 = vst [vmem:[%s248 + $0x20] sm:$0xf] %v541
          %558 = vst [vmem:[%s248 + $0x24] sm:$0xf] %v542
          %559 = vst [vmem:[%s248 + $0x28] sm:$0xf] %v543
          %560 = vst [vmem:[%s248 + $0x2c] sm:$0xf] %v544
          %561 = vst [vmem:[%s248 + $0x30] sm:$0xf] %v545
          %562 = vst [vmem:[%s248 + $0x34] sm:$0xf] %v546
          %563 = vst [vmem:[%s248 + $0x38] sm:$0xf] %v547
          %564 = vst [vmem:[%s248 + $0x3c] sm:$0xf] %v548
        $region48: #{tpu_custom_call.1} parent=31 // pred_fallthru
          _
        %s565 = sand.u32 %s118, 1
        %s566 = scalar_lea.sflag [#allocation5], %s565
        %s567 = sand.u32 %s118, 1
        %s568 = smul.addr %s567, 64
        %s569 = scalar_lea.vmem [#allocation8], %s568
        // Predicated region
        $region49: #{tpu_custom_call.1} parent=31 // pred_check
          %p570 = pneg %p128
        $region50: #{tpu_custom_call.1} parent=31 // pred_check_branch
          %572 = sbr.rel (%p570) target = $region52
        $region51: #{tpu_custom_call.1} parent=31 // pred_region
          %s573 = smul.u32 16, %s27
          %575 = vsyncadd %s566, 0
          %s576 = smul.addr %s573, 4
          %s577 = scalar_lea.hbm %s3, %s576
          %s578 = sshll.u32 %s569, 4
          %s579 = int_to_ptr.vmem [resolvable:$true] %s578
          %s580 = sshll.u32 %s577, 4
          %s581 = int_to_ptr.hbm [resolvable:$true] %s580
          %586 = dma.vmem_to_hbm [thread:$0]  %s579, 1024, %s581, %s566, 64, 64, 4
        $region52: #{tpu_custom_call.1} parent=31 // pred_fallthru
          _
      $region32: #{tpu_custom_call.1} parent=5 // pred_fallthru
        _
      %p587 = scmp.le.s32.totalorder 2, %s18
      // Predicated region
      $region53: #{tpu_custom_call.1} parent=5 // pred_check
        %p588 = pneg %p587
      $region54: #{tpu_custom_call.1} parent=5 // pred_check_branch
        %590 = sbr.rel (%p588) target = $region56
      $region55: #{tpu_custom_call.1} parent=5 // pred_region
        %s591 = ssub.s32 %s18, 2
        // Predicated region
        $region57: #{tpu_custom_call.1} parent=55 // pred_check
          %p592 = pneg %p134
        $region58: #{tpu_custom_call.1} parent=55 // pred_check_branch
          %594 = sbr.rel (%p592) target = $region60
        $region59: #{tpu_custom_call.1} parent=55 // pred_region
          %s595 = sand.u32 %s119, 1
          %s596 = scalar_lea.sflag [#allocation5], %s595
          %s597 = sand.u32 %s119, 1
          %s598 = smul.addr %s597, 64
          %s599 = scalar_lea.vmem [#allocation8], %s598
          %601 = dma.done %s596, 1024
        $region60: #{tpu_custom_call.1} parent=55 // pred_fallthru
          _
      $region56: #{tpu_custom_call.1} parent=5 // pred_fallthru
        _
    $region6: #{tpu_custom_call.1} parent=1 // loop_footer
      %s22 = sadd.s32 1, %s18
    $region7: #{tpu_custom_call.1} parent=1 // loop_footer_branch
      %17 = sbr.rel target = $region3
    $region8: #{tpu_custom_call.1} parent=1 // loop_exit
      _
    %602 = vsyncpa [#allocation4], 1
    %s603 = scalar_lea.sflag [#allocation4], 1
    %604 = vsyncpa %s603, 1
    %605 = vsyncpa [#allocation7], 1
    %s606 = scalar_lea.sflag [#allocation7], 1
    %607 = vsyncpa %s606, 1
    %608 = vsyncpa [#allocation5], 1
    %s609 = scalar_lea.sflag [#allocation5], 1
    %610 = vsyncpa %s609, 1

</llo_original>
